<compile_context>
chip_gen: v7x
topology: tpu7x:2x2x1
jax: 0.10.0
libtpu: 0.0.40
codegen_flags: <defaults>
</compile_context>

<pallas_src>
import jax
import jax.numpy as jnp
from jax import lax
from jax.experimental import pallas as pl
from jax.experimental.pallas import tpu as pltpu


# ---------------------------------------------------------------------------
# Kernel 1: fused QKV projection (runs once per token; never per query tile)
# ---------------------------------------------------------------------------
def _qkv_proj_kernel(x_ref, wqkv_ref, q_ref, k_ref, v_ref):
    # x_ref    : (C, TT)     bf16   transposed activation tile
    # wqkv_ref : (3*HH, C)   bf16   rows = [Wq^T * hs^-0.5 ; Wk^T ; Wv^T]
    # q/k/v_ref: (H, TT, hs) bf16   per-head, token-major outputs
    H, TT, hs = q_ref.shape
    HH = H * hs

    # One MXU pass for Q, K and V (bf16 operands, f32 accumulation).
    qkv = jnp.dot(wqkv_ref[...], x_ref[...],
                  preferred_element_type=jnp.float32)          # (3HH, TT)
    qkv = qkv.astype(jnp.bfloat16)                              # cast before transposes

    def to_head_major(m):                                       # (HH, TT) -> (H, TT, hs)
        # reshape is a free major/sublane split; transpose is a batched minor 2-D
        # transpose done once per token (hoisted out of the attention inner loop).
        return jnp.transpose(m.reshape(H, hs, TT), (0, 2, 1))

    q_ref[...] = to_head_major(qkv[:HH])
    k_ref[...] = to_head_major(qkv[HH:2 * HH])
    v_ref[...] = to_head_major(qkv[2 * HH:])


# ---------------------------------------------------------------------------
# Kernel 2: causal flash attention + fused output projection
# ---------------------------------------------------------------------------
def _flash_attn_kernel(q_ref, k_ref, v_ref, wo_ref, bo_ref, o_ref,
                       m_sc, l_sc, acc_sc):
    # q_ref : (H, TQ, hs) bf16     (scale already folded into Wq)
    # k_ref : (H, TK, hs) bf16
    # v_ref : (H, TK, hs) bf16
    # wo_ref: (HH, C)     bf16
    # bo_ref: (1, C)      f32
    # o_ref : (TQ, C)
    # m_sc  : (H, TQ, 1)  f32  running max
    # l_sc  : (H, TQ, 1)  f32  running sum
    # acc_sc: (H, TQ, hs) f32  unnormalized P@V accumulator
    i = pl.program_id(1)
    j = pl.program_id(2)
    H, TQ, hs = q_ref.shape
    TK = k_ref.shape[1]
    HH = H * hs

    @pl.when(j == 0)
    def _init():
        m_sc[...] = jnp.full_like(m_sc, -1e30)     # finite: no inf-inf -> NaN risk
        l_sc[...] = jnp.zeros_like(l_sc)
        acc_sc[...] = jnp.zeros_like(acc_sc)

    q_start = i * TQ
    kv_start = j * TK

    # Skip KV tiles that lie entirely above the causal diagonal (~2x fewer FLOPs).
    @pl.when(kv_start <= q_start + (TQ - 1))
    def _compute():
        # scores for all heads: one batched MXU matmul (bf16 operands, f32 acc)
        s = jnp.einsum('hqd,hkd->hqk', q_ref[...], k_ref[...],
                       preferred_element_type=jnp.float32)       # (H, TQ, TK)

        # causal mask inside the tile (finite large-negative bias)
        row = lax.broadcasted_iota(jnp.int32, (TQ, TK), 0) + q_start
        col = lax.broadcasted_iota(jnp.int32, (TQ, TK), 1) + kv_start
        s = jnp.where((col <= row)[None], s, -1e30)

        # online softmax update (f32; v5e has no bf16 VPU/EUP)
        m_prev = m_sc[...]
        m_new = jnp.maximum(m_prev, jnp.max(s, axis=-1, keepdims=True))
        alpha = jnp.exp(m_prev - m_new)                          # (H, TQ, 1)
        p = jnp.exp(s - m_new)                                   # (H, TQ, TK) f32
        # TODO(synk): attention dropout omitted (module in eval mode -> identity)
        l_sc[...] = alpha * l_sc[...] + jnp.sum(p, axis=-1, keepdims=True)
        m_sc[...] = m_new

        # unnormalized P@V (normalization deferred to the finalize step)
        ctx = jnp.einsum('hqk,hkd->hqd', p.astype(jnp.bfloat16), v_ref[...],
                         preferred_element_type=jnp.float32)     # (H, TQ, hs)
        acc_sc[...] = alpha * acc_sc[...] + ctx

    @pl.when(j == pl.num_programs(2) - 1)
    def _finalize():
        # normalize after P@V: H*TQ*hs multiplies instead of H*TQ*T
        inv_l = pl.reciprocal(l_sc[...], approx=True)            # (H, TQ, 1)
        ctx_n = (acc_sc[...] * inv_l).astype(jnp.bfloat16)       # (H, TQ, hs)
        # head "concat" fused into one flat output projection:
        #   (H, TQ, hs) -> (H, hs, TQ) -> (HH, TQ)   (free major reshape)
        #   out = ctx_flat^T @ Wo   (contraction depth HH, lane-dense (TQ, C) store)
        ctx_flat = jnp.transpose(ctx_n, (0, 2, 1)).reshape(HH, TQ)
        out = lax.dot_general(ctx_flat, wo_ref[...],
                              (((0,), (0,)), ((), ())),
                              preferred_element_type=jnp.float32)  # (TQ, C)
        # TODO(synk): residual dropout omitted (eval mode -> identity)
        o_ref[...] = (out + bo_ref[...]).astype(o_ref.dtype)


# ---------------------------------------------------------------------------
# Wrapper
# ---------------------------------------------------------------------------
def multi_head_attention(x, wk, wq, wv, wo, bo, *, n_heads, head_size,
                         q_tile=None, kv_tile=None, proj_tile=None):
    """x: (B, T, C); wk/wq/wv: (C, HH); wo: (HH, C); bo: (1, C) or (C,)."""
    B, T, C = x.shape
    H, hs = n_heads, head_size
    HH = H * hs
    assert wk.shape == (C, HH) and wq.shape == (C, HH) and wv.shape == (C, HH)
    assert wo.shape == (HH, C)

    def pick(prefs):
        for p in prefs:
            if T % p == 0:
                return p
        return T

    # Per-generation tuning knobs (defaults safe on v5e/v6e/v7x):
    #   v6e: q_tile=256 better fills the 2x256^2 MXU; v5e: larger kv_tile amortizes
    #   per-step overhead; v7x: defaults already fit the 64 MiB VMEM budget.
    q_tile = q_tile or pick((128,))
    kv_tile = kv_tile or pick((512, 256, 128))
    proj_tile = proj_tile or pick((256, 128))
    assert T % q_tile == 0 and T % kv_tile == 0 and T % proj_tile == 0
    num_q, num_kv, num_t = T // q_tile, T // kv_tile, T // proj_tile

    # --- wrapper-side layout plumbing (pure XLA, zero kernel cost) ---
    scale = head_size ** (-0.5)
    x_t = jnp.swapaxes(x, 1, 2).astype(jnp.bfloat16)             # (B, C, T) bf16
    wqkv = jnp.concatenate([(wq * scale).T, wk.T, wv.T],
                           axis=0).astype(jnp.bfloat16)          # (3HH, C)
    wo_b = wo.astype(jnp.bfloat16)                               # (HH, C)
    bo2 = jnp.asarray(bo, jnp.float32).reshape(1, C)

    # VMEM cap: per-step footprint is tile-sized (independent of T), so 48 MiB is
    # ample headroom on all generations and still fits v7x's 64 MiB per-TC VMEM.
    vmem_cap = 48 * 1024 * 1024

    # ---------------- Kernel 1: QKV projection, once per token ----------------
    q3, k3, v3 = pl.pallas_call(
        _qkv_proj_kernel,
        out_shape=tuple(jax.ShapeDtypeStruct((B, H, T, hs), jnp.bfloat16)
                        for _ in range(3)),
        grid_spec=pltpu.PrefetchScalarGridSpec(
            num_scalar_prefetch=0,
            grid=(B, num_t),
            in_specs=[
                pl.BlockSpec((None, C, proj_tile), lambda b, t: (b, 0, t)),
                # constant weight block (NOTE: ideally single-buffered; left default)
                pl.BlockSpec((3 * HH, C), lambda b, t: (0, 0)),
            ],
            out_specs=tuple(
                pl.BlockSpec((None, H, proj_tile, hs), lambda b, t: (b, 0, t, 0))
                for _ in range(3)),
        ),
        compiler_params=pltpu.CompilerParams(
            dimension_semantics=("parallel", "parallel"),
            vmem_limit_bytes=vmem_cap),
    )(x_t, wqkv)

    # ---------------- Kernel 2: causal flash attention + out projection -------
    out = pl.pallas_call(
        _flash_attn_kernel,
        out_shape=jax.ShapeDtypeStruct((B, T, C), x.dtype),
        grid_spec=pltpu.PrefetchScalarGridSpec(
            num_scalar_prefetch=0,
            grid=(B, num_q, num_kv),
            in_specs=[
                pl.BlockSpec((None, H, q_tile, hs), lambda b, i, j: (b, 0, i, 0)),
                pl.BlockSpec((None, H, kv_tile, hs), lambda b, i, j: (b, 0, j, 0)),
                pl.BlockSpec((None, H, kv_tile, hs), lambda b, i, j: (b, 0, j, 0)),
                pl.BlockSpec((HH, C), lambda b, i, j: (0, 0)),
                pl.BlockSpec((1, C), lambda b, i, j: (0, 0)),
            ],
            out_specs=pl.BlockSpec((None, q_tile, C), lambda b, i, j: (b, i, 0)),
            scratch_shapes=[
                pltpu.VMEM((H, q_tile, 1), jnp.float32),    # running max
                pltpu.VMEM((H, q_tile, 1), jnp.float32),    # running sum
                pltpu.VMEM((H, q_tile, hs), jnp.float32),   # unnormalized P@V acc
            ],
        ),
        compiler_params=pltpu.CompilerParams(
            dimension_semantics=("parallel", "parallel", "arbitrary"),
            vmem_limit_bytes=vmem_cap),
    )(q3, k3, v3, wo_b, bo2)
    return out


# ---------------------------------------------------------------------------
# Pure-JAX f32 reference mirroring the PyTorch forward (eval mode)
# ---------------------------------------------------------------------------
def reference_mha(x, wk, wq, wv, wo, bo, *, n_heads, head_size):
    B, T, C = x.shape
    k = x @ wk
    q = x @ wq
    v = x @ wv
    scale = head_size ** (-0.5)
    mask = jnp.tril(jnp.ones((T, T), dtype=bool))
    outs = []
    for h in range(n_heads):
        sl = slice(h * head_size, (h + 1) * head_size)
        wei = q[:, :, sl] @ jnp.swapaxes(k[:, :, sl], -1, -2) * scale
        wei = jnp.where(mask[None], wei, -jnp.inf)
        wei = jax.nn.softmax(wei, axis=-1)
        outs.append(wei @ v[:, :, sl])
    cat = jnp.concatenate(outs, axis=-1)
    return cat @ wo + bo


if __name__ == "__main__":
    # Small shapes consistent with the module.
    B, T = 2, 8                  # batch, sequence length (== block_size)
    n_embd = 32                  # C
    n_heads = 4
    head_size = 8                # n_heads * head_size == n_embd
    HH = n_heads * head_size

    key = jax.random.PRNGKey(0)
    kx, kk, kq, kvk, ko, kb = jax.random.split(key, 6)

    x = jax.random.normal(kx, (B, T, n_embd), dtype=jnp.float32)

    # Deterministic parameter init (PyTorch Linear-like uniform scaling).
    lim_in = 1.0 / (n_embd ** 0.5)
    lim_proj = 1.0 / (HH ** 0.5)
    wk = jax.random.uniform(kk, (n_embd, HH), jnp.float32, -lim_in, lim_in)
    wq = jax.random.uniform(kq, (n_embd, HH), jnp.float32, -lim_in, lim_in)
    wv = jax.random.uniform(kvk, (n_embd, HH), jnp.float32, -lim_in, lim_in)
    wo = jax.random.uniform(ko, (HH, n_embd), jnp.float32, -lim_proj, lim_proj)
    bo = jax.random.uniform(kb, (1, n_embd), jnp.float32, -lim_proj, lim_proj)

    out = multi_head_attention(x, wk, wq, wv, wo, bo,
                               n_heads=n_heads, head_size=head_size)
    out = jax.block_until_ready(out)

    ref = reference_mha(x, wk, wq, wv, wo, bo,
                        n_heads=n_heads, head_size=head_size)
    assert out.shape == (B, T, n_embd)
    # bf16 matmul operands + approx reciprocal -> moderate tolerance vs f32 reference
    assert jnp.allclose(out, ref, atol=2e-2, rtol=2e-2), "mismatch vs reference"

    print("KERNEL_OK")
</pallas_src>

<mosaic_0001>
module attributes {stable_mosaic.version = 11 : i64} {
  func.func @_qkv_proj_kernel(%arg0: i32, %arg1: i32, %arg2: memref<1x32x8xbf16, #tpu.memory_space<vmem>>, %arg3: memref<96x32xbf16, #tpu.memory_space<vmem>>, %arg4: memref<1x4x8x8xbf16, #tpu.memory_space<vmem>>, %arg5: memref<1x4x8x8xbf16, #tpu.memory_space<vmem>>, %arg6: memref<1x4x8x8xbf16, #tpu.memory_space<vmem>>) attributes {dimension_semantics = [#tpu.dimension_semantics<parallel>, #tpu.dimension_semantics<parallel>], iteration_bounds = array<i64: 2, 1>, scalar_prefetch = 0 : i64, scratch_operands = 0 : i64, tpu.core_type = #tpu.core_type<tc>, window_params = [{transform_indices = @transform_0, window_bounds = array<i64: 1, 32, 8>}, {pipeline_mode = #tpu.pipeline_mode<synchronous>, transform_indices = @transform_1, window_bounds = array<i64: 96, 32>}, {transform_indices = @transform_2, window_bounds = array<i64: 1, 4, 8, 8>}, {transform_indices = @transform_3, window_bounds = array<i64: 1, 4, 8, 8>}, {transform_indices = @transform_4, window_bounds = array<i64: 1, 4, 8, 8>}]} {
    %c0 = arith.constant 0 : index
    %c0_0 = arith.constant 0 : index
    %0 = vector.load %arg3[%c0, %c0_0] : memref<96x32xbf16, #tpu.memory_space<vmem>>, vector<96x32xbf16>
    %c0_1 = arith.constant 0 : index
    %c0_2 = arith.constant 0 : index
    %c0_3 = arith.constant 0 : index
    %1 = vector.load %arg2[%c0_1, %c0_2, %c0_3] : memref<1x32x8xbf16, #tpu.memory_space<vmem>>, vector<1x32x8xbf16>
    %2 = vector.shape_cast %1 : vector<1x32x8xbf16> to vector<32x8xbf16>
    %cst = arith.constant dense<0.000000e+00> : vector<96x8xf32>
    %3 = tpu.matmul %0, %2, %cst {dimension_numbers = #tpu.dot_dimension_numbers<[1], [0], [0], [1], [0, 0, 1, 1], [], []>} : vector<96x32xbf16>, vector<32x8xbf16>, vector<96x8xf32> -> vector<96x8xf32>
    %4 = arith.truncf %3 : vector<96x8xf32> to vector<96x8xbf16>
    %5 = vector.extract_strided_slice %4 {offsets = [0, 0], sizes = [32, 8], strides = [1, 1]} : vector<96x8xbf16> to vector<32x8xbf16>
    %6 = vector.shape_cast %5 : vector<32x8xbf16> to vector<4x8x8xbf16>
    %7 = tpu.transpose %6, [0, 2, 1] : vector<4x8x8xbf16> -> vector<4x8x8xbf16>
    %c0_4 = arith.constant 0 : index
    %c0_5 = arith.constant 0 : index
    %c0_6 = arith.constant 0 : index
    %c0_7 = arith.constant 0 : index
    %8 = vector.load %arg4[%c0_4, %c0_5, %c0_6, %c0_7] : memref<1x4x8x8xbf16, #tpu.memory_space<vmem>>, vector<1x4x8x8xbf16>
    %9 = vector.shape_cast %8 : vector<1x4x8x8xbf16> to vector<4x8x8xbf16>
    %10 = vector.shape_cast %7 : vector<4x8x8xbf16> to vector<1x4x8x8xbf16>
    tpu.vector_store %arg4[%c0_4, %c0_5, %c0_6, %c0_7], %10 {strides = array<i32>} : memref<1x4x8x8xbf16, #tpu.memory_space<vmem>>, vector<1x4x8x8xbf16>,
    %11 = vector.extract_strided_slice %4 {offsets = [32, 0], sizes = [32, 8], strides = [1, 1]} : vector<96x8xbf16> to vector<32x8xbf16>
    %12 = vector.shape_cast %11 : vector<32x8xbf16> to vector<4x8x8xbf16>
    %13 = tpu.transpose %12, [0, 2, 1] : vector<4x8x8xbf16> -> vector<4x8x8xbf16>
    %c0_8 = arith.constant 0 : index
    %c0_9 = arith.constant 0 : index
    %c0_10 = arith.constant 0 : index
    %c0_11 = arith.constant 0 : index
    %14 = vector.load %arg5[%c0_8, %c0_9, %c0_10, %c0_11] : memref<1x4x8x8xbf16, #tpu.memory_space<vmem>>, vector<1x4x8x8xbf16>
    %15 = vector.shape_cast %14 : vector<1x4x8x8xbf16> to vector<4x8x8xbf16>
    %16 = vector.shape_cast %13 : vector<4x8x8xbf16> to vector<1x4x8x8xbf16>
    tpu.vector_store %arg5[%c0_8, %c0_9, %c0_10, %c0_11], %16 {strides = array<i32>} : memref<1x4x8x8xbf16, #tpu.memory_space<vmem>>, vector<1x4x8x8xbf16>,
    %17 = vector.extract_strided_slice %4 {offsets = [64, 0], sizes = [32, 8], strides = [1, 1]} : vector<96x8xbf16> to vector<32x8xbf16>
    %18 = vector.shape_cast %17 : vector<32x8xbf16> to vector<4x8x8xbf16>
    %19 = tpu.transpose %18, [0, 2, 1] : vector<4x8x8xbf16> -> vector<4x8x8xbf16>
    %c0_12 = arith.constant 0 : index
    %c0_13 = arith.constant 0 : index
    %c0_14 = arith.constant 0 : index
    %c0_15 = arith.constant 0 : index
    %20 = vector.load %arg6[%c0_12, %c0_13, %c0_14, %c0_15] : memref<1x4x8x8xbf16, #tpu.memory_space<vmem>>, vector<1x4x8x8xbf16>
    %21 = vector.shape_cast %20 : vector<1x4x8x8xbf16> to vector<4x8x8xbf16>
    %22 = vector.shape_cast %19 : vector<4x8x8xbf16> to vector<1x4x8x8xbf16>
    tpu.vector_store %arg6[%c0_12, %c0_13, %c0_14, %c0_15], %22 {strides = array<i32>} : memref<1x4x8x8xbf16, #tpu.memory_space<vmem>>, vector<1x4x8x8xbf16>,
    return
  }
  func.func @transform_0(%arg0: i32, %arg1: i32) -> (i32, i32, i32) {
    %c0_i32 = arith.constant 0 : i32
    %c0_i32_0 = arith.constant 0 : i32
    return %arg0, %c0_i32, %arg1 : i32, i32, i32
  }
  func.func @transform_1(%arg0: i32, %arg1: i32) -> (i32, i32) {
    %c0_i32 = arith.constant 0 : i32
    %c0_i32_0 = arith.constant 0 : i32
    %c0_i32_1 = arith.constant 0 : i32
    return %c0_i32, %c0_i32_0 : i32, i32
  }
  func.func @transform_2(%arg0: i32, %arg1: i32) -> (i32, i32, i32, i32) {
    %c0_i32 = arith.constant 0 : i32
    %c0_i32_0 = arith.constant 0 : i32
    %c0_i32_1 = arith.constant 0 : i32
    return %arg0, %c0_i32, %arg1, %c0_i32_0 : i32, i32, i32, i32
  }
  func.func @transform_3(%arg0: i32, %arg1: i32) -> (i32, i32, i32, i32) {
    %c0_i32 = arith.constant 0 : i32
    %c0_i32_0 = arith.constant 0 : i32
    %c0_i32_1 = arith.constant 0 : i32
    return %arg0, %c0_i32, %arg1, %c0_i32_0 : i32, i32, i32, i32
  }
  func.func @transform_4(%arg0: i32, %arg1: i32) -> (i32, i32, i32, i32) {
    %c0_i32 = arith.constant 0 : i32
    %c0_i32_0 = arith.constant 0 : i32
    %c0_i32_1 = arith.constant 0 : i32
    return %arg0, %c0_i32, %arg1, %c0_i32_0 : i32, i32, i32, i32
  }
}

</mosaic_0001>

<llo_original>
// kernel: tpu_custom_call.1
$region0: #{tpu_custom_call.1}
  #allocation0 [shape = 'u32[]', space=smem, size = 0x4, offset = 0x4, fixed_abs, tag = 'smem constant byte address 0x4 - core index']
  #allocation1 [shape = 'u32[144,128]{1,0:T(1,128)}', space=vmem, size = 0x12000, scoped, tag = 'internal scratch']
  %s0 = inlined_call_operand.vmem [shape: bf16[2,32,8], index: 0, kind: input, shape index: {}]
  %s1 = inlined_call_operand.vmem [shape: bf16[96,32], index: 1, kind: input, shape index: {}]
  %s2 = inlined_call_operand.hbm [shape: bf16[2,4,8,8], index: 2, kind: output, shape index: {0}]
  %s3 = inlined_call_operand.hbm [shape: bf16[2,4,8,8], index: 3, kind: output, shape index: {1}]
  %s4 = inlined_call_operand.hbm [shape: bf16[2,4,8,8], index: 4, kind: output, shape index: {2}]
  %5 = xla_tuple %s2, %s3, %s4
  %s6 = sld [smem:[#allocation0]]
  $region57: #{tpu_custom_call.1} parent=0
    _
  %s8 = ssub.s32 1, %s6
  %s9 = scalar_select 0, %s8, %s6
  $region1: #{tpu_custom_call.1} parent=0
    #allocation2 [shape = 'u8[16384]{0}', space=vmem, size = 0x4000, scoped, tag = 'output window, operand 0']
    #allocation3 [shape = 's32[2]{0}', space=sflag, size = 0x8, scoped, tag = 'scoped memory for tpu_custom_call.1']
    #allocation4 [shape = 'u8[16384]{0}', space=vmem, size = 0x4000, scoped, tag = 'output window, operand 1']
    #allocation5 [shape = 's32[2]{0}', space=sflag, size = 0x8, scoped, tag = 'scoped memory for tpu_custom_call.1']
    #allocation6 [shape = 'u8[16384]{0}', space=vmem, size = 0x4000, scoped, tag = 'output window, operand 2']
    %10 = vsyncpa [#allocation3], 0
    %s11 = scalar_lea.sflag [#allocation3], 1
    %12 = vsyncpa %s11, 0
    %13 = vsyncpa [#allocation5], 0
    %s14 = scalar_lea.sflag [#allocation5], 1
    %15 = vsyncpa %s14, 0
    loop: start=0, step=1, limit=4
    $region2: #{tpu_custom_call.1} parent=1 // loop_pre_header
      _
    $region3: #{tpu_custom_call.1} parent=1 // loop_header
      %s17 = sphi 0, %s21
      %p18 = scmp.ge.s32.totalorder %s17, 4
      %s24 = sphi 0, %s36
      %s25 = sphi 0, %s32
      %s26 = sphi 0, %s24
      %s27 = sphi 0, %s25
      %s28 = sphi 0, %s26
      %s29 = sphi 0, %s27
      %s41 = sphi 0, %s43
      %s44 = sphi 0, %s41
      %s45 = sphi 0, %s44
      %s61 = sphi 0, %s45
      %s65 = sphi 0, %s65
      %s67 = sphi 0, %s65
      %s68 = sphi 0, %s67
      %s82 = sphi 0, %s68
      %s90 = sphi 0, %s92
      %s93 = sphi 0, %s90
      %s94 = sphi 0, %s93
      %s110 = sphi 0, %s94
      %s118 = sphi 0, %s120
      %s121 = sphi 0, %s118
      %s122 = sphi 0, %s121
      %s138 = sphi 0, %s122
      %s146 = sphi 0, %s148
      %s149 = sphi 0, %s146
      %s150 = sphi 0, %s149
      %s166 = sphi 0, %s150
    $region4: #{tpu_custom_call.1} parent=1 // loop_header_branch
      %20 = sbr.rel (%p18) target = $region8
    $region5: #{tpu_custom_call.1} parent=1 // loop_body
      %s22 = ssub.s32 %s17, 1
      %s23 = ssub.s32 %s17, 2
      %s30 = sadd.s32 1, %s25
      %p31 = scmp.ge.s32.totalorder %s30, 1
      %s32 = scalar_select %p31, 0, %s30
      %s33 = sadd.s32 1, %s24
      %s34 = scalar_select %p31, %s33, %s24
      %p35 = scmp.ge.s32.totalorder %s34, 2
      %s36 = scalar_select %p35, 0, %s34
      %s37 = ssub.s32 %s24, %s36
      %s38 = ssub.s32 %s25, %s32
      %s39 = sor.u32 %s37, %s38
      %p40 = scmp.eq.s32.totalorder %s39, 0
      %s42 = sadd.s32 %s41, 1
      %s43 = scalar_select %p40, %s41, %s42
      %p46 = pneg %p40
      %p47 = scmp.eq.s32.totalorder %s17, 1
      %p48 = por %p46, %p47
      %p49 = scmp.ne.s32.totalorder %s41, %s44
      %p50 = scmp.eq.s32.totalorder %s17, 0
      %p51 = por %p49, %p50
      %p52 = scmp.ne.s32.totalorder %s41, %s44
      %p53 = scmp.eq.s32.totalorder %s22, 1
      %p54 = por %p52, %p53
      %p55 = scmp.ne.s32.totalorder %s44, %s45
      %p56 = scmp.eq.s32.totalorder %s22, 0
      %p57 = por %p55, %p56
      %p58 = scmp.ne.s32.totalorder %s44, %s45
      %p59 = scmp.eq.s32.totalorder %s23, 1
      %p60 = por %p58, %p59
      %p62 = scmp.ne.s32.totalorder %s45, %s61
      %p63 = scmp.eq.s32.totalorder %s23, 0
      %p64 = por %p62, %p63
      %s66 = sadd.s32 %s65, 1
      %p69 = scmp.eq.s32.totalorder %s17, 1
      %p70 = scmp.ne.s32.totalorder %s65, %s67
      %p71 = scmp.eq.s32.totalorder %s17, 0
      %p72 = por %p70, %p71
      %p73 = scmp.ne.s32.totalorder %s65, %s67
      %p74 = scmp.eq.s32.totalorder %s22, 1
      %p75 = por %p73, %p74
      %p76 = scmp.ne.s32.totalorder %s67, %s68
      %p77 = scmp.eq.s32.totalorder %s22, 0
      %p78 = por %p76, %p77
      %p79 = scmp.ne.s32.totalorder %s67, %s68
      %p80 = scmp.eq.s32.totalorder %s23, 1
      %p81 = por %p79, %p80
      %p83 = scmp.ne.s32.totalorder %s68, %s82
      %p84 = scmp.eq.s32.totalorder %s23, 0
      %p85 = por %p83, %p84
      %s86 = ssub.s32 %s24, %s36
      %s87 = ssub.s32 %s25, %s32
      %s88 = sor.u32 %s86, %s87
      %p89 = scmp.eq.s32.totalorder %s88, 0
      %s91 = sadd.s32 %s90, 1
      %s92 = scalar_select %p89, %s90, %s91
      %p95 = pneg %p89
      %p96 = scmp.eq.s32.totalorder %s17, 1
      %p97 = por %p95, %p96
      %p98 = scmp.ne.s32.totalorder %s90, %s93
      %p99 = scmp.eq.s32.totalorder %s17, 0
      %p100 = por %p98, %p99
      %p101 = scmp.ne.s32.totalorder %s90, %s93
      %p102 = scmp.eq.s32.totalorder %s22, 1
      %p103 = por %p101, %p102
      %p104 = scmp.ne.s32.totalorder %s93, %s94
      %p105 = scmp.eq.s32.totalorder %s22, 0
      %p106 = por %p104, %p105
      %p107 = scmp.ne.s32.totalorder %s93, %s94
      %p108 = scmp.eq.s32.totalorder %s23, 1
      %p109 = por %p107, %p108
      %p111 = scmp.ne.s32.totalorder %s94, %s110
      %p112 = scmp.eq.s32.totalorder %s23, 0
      %p113 = por %p111, %p112
      %s114 = ssub.s32 %s24, %s36
      %s115 = ssub.s32 %s25, %s32
      %s116 = sor.u32 %s114, %s115
      %p117 = scmp.eq.s32.totalorder %s116, 0
      %s119 = sadd.s32 %s118, 1
      %s120 = scalar_select %p117, %s118, %s119
      %p123 = pneg %p117
      %p124 = scmp.eq.s32.totalorder %s17, 1
      %p125 = por %p123, %p124
      %p126 = scmp.ne.s32.totalorder %s118, %s121
      %p127 = scmp.eq.s32.totalorder %s17, 0
      %p128 = por %p126, %p127
      %p129 = scmp.ne.s32.totalorder %s118, %s121
      %p130 = scmp.eq.s32.totalorder %s22, 1
      %p131 = por %p129, %p130
      %p132 = scmp.ne.s32.totalorder %s121, %s122
      %p133 = scmp.eq.s32.totalorder %s22, 0
      %p134 = por %p132, %p133
      %p135 = scmp.ne.s32.totalorder %s121, %s122
      %p136 = scmp.eq.s32.totalorder %s23, 1
      %p137 = por %p135, %p136
      %p139 = scmp.ne.s32.totalorder %s122, %s138
      %p140 = scmp.eq.s32.totalorder %s23, 0
      %p141 = por %p139, %p140
      %s142 = ssub.s32 %s24, %s36
      %s143 = ssub.s32 %s25, %s32
      %s144 = sor.u32 %s142, %s143
      %p145 = scmp.eq.s32.totalorder %s144, 0
      %s147 = sadd.s32 %s146, 1
      %s148 = scalar_select %p145, %s146, %s147
      %p151 = pneg %p145
      %p152 = scmp.eq.s32.totalorder %s17, 1
      %p153 = por %p151, %p152
      %p154 = scmp.ne.s32.totalorder %s146, %s149
      %p155 = scmp.eq.s32.totalorder %s17, 0
      %p156 = por %p154, %p155
      %p157 = scmp.ne.s32.totalorder %s146, %s149
      %p158 = scmp.eq.s32.totalorder %s22, 1
      %p159 = por %p157, %p158
      %p160 = scmp.ne.s32.totalorder %s149, %s150
      %p161 = scmp.eq.s32.totalorder %s22, 0
      %p162 = por %p160, %p161
      %p163 = scmp.ne.s32.totalorder %s149, %s150
      %p164 = scmp.eq.s32.totalorder %s23, 1
      %p165 = por %p163, %p164
      %p167 = scmp.ne.s32.totalorder %s150, %s166
      %p168 = scmp.eq.s32.totalorder %s23, 0
      %p169 = por %p167, %p168
      %p170 = scmp.le.s32.totalorder 1, %s17
      %p171 = scmp.lt.s32.totalorder %s17, 3
      %p172 = pnand %p170, %p171
      %p173 = pneg %p172
      // Predicated region
      $region9: #{tpu_custom_call.1} parent=5 // pred_check
        _
      $region10: #{tpu_custom_call.1} parent=5 // pred_check_branch
        %175 = sbr.rel (%p172) target = $region12
      $region11: #{tpu_custom_call.1} parent=5 // pred_region
        %s176 = ssub.s32 %s17, 1
        // Predicated region
        $region13: #{tpu_custom_call.1} parent=11 // pred_check
          %p177 = pneg %p78
        $region14: #{tpu_custom_call.1} parent=11 // pred_check_branch
          %179 = sbr.rel (%p177) target = $region16
        $region15: #{tpu_custom_call.1} parent=11 // pred_region
          _
        $region16: #{tpu_custom_call.1} parent=11 // pred_fallthru
          _
      $region12: #{tpu_custom_call.1} parent=5 // pred_fallthru
        _
      %p180 = scmp.lt.s32.totalorder %s17, 2
      // Predicated region
      $region17: #{tpu_custom_call.1} parent=5 // pred_check
        %p181 = pneg %p180
      $region18: #{tpu_custom_call.1} parent=5 // pred_check_branch
        %183 = sbr.rel (%p181) target = $region20
      $region19: #{tpu_custom_call.1} parent=5 // pred_region
        // Predicated region
        $region21: #{tpu_custom_call.1} parent=19 // pred_check
          %p184 = pneg %p51
        $region22: #{tpu_custom_call.1} parent=19 // pred_check_branch
          %186 = sbr.rel (%p184) target = $region24
        $region23: #{tpu_custom_call.1} parent=19 // pred_region
          %p187 = scmp.lt.s32.totalorder %s24, 1
          %s188 = scalar_select %p187, %s24, 1
          %p189 = scmp.lt.s32.totalorder %s25, 0
          %s190 = scalar_select %p189, %s25, 0
          %s191 = smul.addr %s188, 4
          %s192 = sadd.s32 %s190, %s191
          %s193 = smul.addr %s192, 4
          %s194 = scalar_lea.vmem %s0, %s193
        $region24: #{tpu_custom_call.1} parent=19 // pred_fallthru
          _
      $region20: #{tpu_custom_call.1} parent=5 // pred_fallthru
        _
      %p195 = scmp.le.s32.totalorder 1, %s17
      %p196 = scmp.lt.s32.totalorder %s17, 3
      %p197 = pnand %p195, %p196
      %p198 = pneg %p197
      // Predicated region
      $region25: #{tpu_custom_call.1} parent=5 // pred_check
        _
      $region26: #{tpu_custom_call.1} parent=5 // pred_check_branch
        %200 = sbr.rel (%p197) target = $region28
      $region27: #{tpu_custom_call.1} parent=5 // pred_region
        %s201 = ssub.s32 %s17, 1
        %p202 = scmp.lt.s32.totalorder %s26, 1
        %s203 = scalar_select %p202, %s26, 1
        %p204 = scmp.lt.s32.totalorder %s27, 0
        %s205 = scalar_select %p204, %s27, 0
        %s206 = smul.addr %s203, 4
        %s207 = sadd.s32 %s205, %s206
        %s208 = smul.addr %s207, 4
        %s209 = scalar_lea.vmem %s0, %s208
        %p210 = pneg %p57
        %p211 = pneg %p54
        %p212 = pneg %p78
        %p213 = pneg %p75
        %p214 = pneg %p106
        %p215 = pneg %p103
        %s216 = sand.u32 %s93, 1
        %s217 = scalar_lea.sflag [#allocation3], %s216
        %s218 = sand.u32 %s93, 1
        %s219 = smul.addr %s218, 16
        %s220 = scalar_lea.vmem [#allocation2], %s219
        %p221 = pneg %p134
        %p222 = pneg %p131
        %s223 = sand.u32 %s22, 1
        %s224 = scalar_lea.sflag [#allocation5], %s223
        %s225 = sand.u32 %s121, 1
        %s226 = smul.addr %s225, 16
        %s227 = scalar_lea.vmem [#allocation4], %s226
        %p228 = pneg %p162
        %p229 = pneg %p159
        %s230 = sand.u32 %s22, 1
        %s231 = scalar_lea.sflag [#allocation5], %s230
        %s232 = sand.u32 %s149, 1
        %s233 = smul.addr %s232, 16
        %s234 = scalar_lea.vmem [#allocation6], %s233
        %p235 = scmp.lt.s32.totalorder %s26, 1
        %s236 = scalar_select %p235, %s26, 1
        %p237 = scmp.lt.s32.totalorder %s27, 0
        %s238 = scalar_select %p237, %s27, 0
        %s239 = smul.addr %s236, 4
        %s240 = sadd.s32 %s238, %s239
        %s241 = smul.addr %s240, 4
        %s242 = scalar_lea.vmem %s0, %s241
        %v244 = vld [vmem:[%s1] sm:$0xf]
        %v245 = vld [vmem:[%s1 + $0x4] sm:$0xf]
        %v246 = vld [vmem:[%s1 + $0x8] sm:$0xf]
        %v247 = vld [vmem:[%s1 + $0xc] sm:$0xf]
        %v248 = vld [vmem:[%s1 + $0x10] sm:$0xf]
        %v249 = vld [vmem:[%s1 + $0x14] sm:$0xf]
        %v250 = vld [vmem:[%s1 + $0x18] sm:$0xf]
        %v251 = vld [vmem:[%s1 + $0x1c] sm:$0xf]
        %v252 = vld [vmem:[%s1 + $0x20] sm:$0xf]
        %v253 = vld [vmem:[%s1 + $0x24] sm:$0xf]
        %v254 = vld [vmem:[%s1 + $0x28] sm:$0xf]
        %v255 = vld [vmem:[%s1 + $0x2c] sm:$0xf]
        %v256 = vld [vmem:[%s242] sm:$0xf]
        %v257 = vld [vmem:[%s242 + $0x4] sm:$0xf]
        %v258 = vld [vmem:[%s242 + $0x8] sm:$0xf]
        %v259 = vld [vmem:[%s242 + $0xc] sm:$0xf]
        %v272 = vunpack.c.l.b16 %v244
        %v273 = vunpack.c.l.b16 %v245
        %v274 = vunpack.c.l.b16 %v246
        %v275 = vunpack.c.l.b16 %v247
        %v276 = vunpack.c.l.b16 %v248
        %v277 = vunpack.c.l.b16 %v249
        %v278 = vunpack.c.l.b16 %v250
        %v279 = vunpack.c.l.b16 %v251
        %v280 = vunpack.c.l.b16 %v252
        %v281 = vunpack.c.l.b16 %v253
        %v282 = vunpack.c.l.b16 %v254
        %v283 = vunpack.c.l.b16 %v255
        %v284 = vpack.c.b16 %v273, %v272
        %v285 = vpack.c.b16 %v275, %v274
        %v286 = vpack.c.b16 %v277, %v276
        %v287 = vpack.c.b16 %v279, %v278
        %v288 = vpack.c.b16 %v281, %v280
        %v289 = vpack.c.b16 %v283, %v282
        %v294 = vunpack.c.l.b16 %v256
        %v295 = vunpack.c.l.b16 %v257
        %v296 = vunpack.c.l.b16 %v258
        %v297 = vunpack.c.l.b16 %v259
        %v298 = vpack.c.b16 %v295, %v294
        %v299 = vpack.c.b16 %v297, %v296
        %vm302 = vcmask 261120
        %v304 = vsel %vm302, %v284, 0
        %v307 = vsel %vm302, %v285, 0
        %v310 = vsel %vm302, %v286, 0
        %v313 = vsel %vm302, %v287, 0
        %v316 = vsel %vm302, %v288, 0
        %v319 = vsel %vm302, %v289, 0
        %321 = vmatprep.subr.bf16.mxu0 0
        %322 = vmatpush1.bf16.msra.mxu0 %v298
        %323 = vmatprep.subr.bf16.mxu0 0
        %324 = vmatpush1.bf16.msra.mxu0 %v299
        %325 = vmatprep.subr.bf16.mxu0 0
        %326 = vmatpush1.bf16.msra.mxu0 0
        %327 = vmatprep.subr.bf16.mxu0 0
        %328 = vmatpush1.bf16.msra.mxu0 0
        %329 = vmatprep.subr.bf16.mxu0 0
        %330 = vmatpush1.bf16.msra.mxu0 0
        %331 = vmatprep.subr.bf16.mxu0 0
        %332 = vmatpush1.bf16.msra.mxu0 0
        %333 = vmatprep.subr.bf16.mxu0 0
        %334 = vmatpush1.bf16.msra.mxu0 0
        %335 = vmatprep.subr.bf16.mxu0 0
        %336 = vmatpush1.bf16.msra.mxu0 0
        %337 = vmatprep.subr.bf16.mxu0 0
        %338 = vmatpush1.bf16.msra.mxu0 0
        %339 = vmatprep.subr.bf16.mxu0 0
        %340 = vmatpush1.bf16.msra.mxu0 0
        %341 = vmatprep.subr.bf16.mxu0 0
        %342 = vmatpush1.bf16.msra.mxu0 0
        %343 = vmatprep.subr.bf16.mxu0 0
        %344 = vmatpush1.bf16.msra.mxu0 0
        %345 = vmatprep.subr.bf16.mxu0 0
        %346 = vmatpush1.bf16.msra.mxu0 0
        %347 = vmatprep.subr.bf16.mxu0 0
        %348 = vmatpush1.bf16.msra.mxu0 0
        %349 = vmatprep.subr.bf16.mxu0 0
        %350 = vmatpush1.bf16.msra.mxu0 0
        %351 = vmatprep.subr.bf16.mxu0 0
        %352 = vmatpush1.bf16.msra.mxu0 0
        %353 = vmatprep.mubr.bf16.mxu0 0
        %354 = vmatmul.mubr.bf16.gmra.mrb[0].mxu0 %v304
        %v355 = vpop.f32.mrb[0].mxu0
        %v356 = vadd.f32 0.0, %v355
        %v357 = vpop.f32.mrb[0].mxu0
        %v358 = vpop.f32.mrb[0].mxu0
        %v359 = vadd.f32 0.0, %v358
        %v360 = vpop.f32.mrb[0].mxu0
        %361 = vmatprep.mubr.bf16.mxu0 0
        %362 = vmatmul.mubr.bf16.gmra.mrb[0].mxu0 %v307
        %v363 = vpop.f32.mrb[0].mxu0
        %v364 = vadd.f32 0.0, %v363
        %v365 = vpop.f32.mrb[0].mxu0
        %v366 = vpop.f32.mrb[0].mxu0
        %v367 = vadd.f32 0.0, %v366
        %v368 = vpop.f32.mrb[0].mxu0
        %369 = vmatprep.mubr.bf16.mxu0 0
        %370 = vmatmul.mubr.bf16.gmra.mrb[0].mxu0 %v310
        %v371 = vpop.f32.mrb[0].mxu0
        %v372 = vadd.f32 0.0, %v371
        %v373 = vpop.f32.mrb[0].mxu0
        %v374 = vpop.f32.mrb[0].mxu0
        %v375 = vadd.f32 0.0, %v374
        %v376 = vpop.f32.mrb[0].mxu0
        %377 = vmatprep.mubr.bf16.mxu0 0
        %378 = vmatmul.mubr.bf16.gmra.mrb[0].mxu0 %v313
        %v379 = vpop.f32.mrb[0].mxu0
        %v380 = vadd.f32 0.0, %v379
        %v381 = vpop.f32.mrb[0].mxu0
        %v382 = vpop.f32.mrb[0].mxu0
        %v383 = vadd.f32 0.0, %v382
        %v384 = vpop.f32.mrb[0].mxu0
        %385 = vmatprep.mubr.bf16.mxu0 0
        %386 = vmatmul.mubr.bf16.gmra.mrb[0].mxu0 %v316
        %v387 = vpop.f32.mrb[0].mxu0
        %v388 = vadd.f32 0.0, %v387
        %v389 = vpop.f32.mrb[0].mxu0
        %v390 = vpop.f32.mrb[0].mxu0
        %v391 = vadd.f32 0.0, %v390
        %v392 = vpop.f32.mrb[0].mxu0
        %393 = vmatprep.mubr.bf16.mxu0 0
        %394 = vmatmul.mubr.bf16.gmra.mrb[0].mxu0 %v319
        %v395 = vpop.f32.mrb[0].mxu0
        %v396 = vadd.f32 0.0, %v395
        %v397 = vpop.f32.mrb[0].mxu0
        %v398 = vpop.f32.mrb[0].mxu0
        %v399 = vadd.f32 0.0, %v398
        %v400 = vpop.f32.mrb[0].mxu0
        %401 = vdwg.mxu0
        %v402 = vpack.c.bf16 %v359, %v356
        %v403 = vpack.c.bf16 %v367, %v364
        %v404 = vpack.c.bf16 %v375, %v372
        %v405 = vpack.c.bf16 %v383, %v380
        %v406 = vpack.c.bf16 %v391, %v388
        %v407 = vpack.c.bf16 %v399, %v396
        %v410 = vunpack.c.l.b16 %v402
        %v411 = vunpack.c.h.b16 %v402
        %v412 = vunpack.c.l.b16 %v403
        %v413 = vunpack.c.h.b16 %v403
        %v414 = vpack.c.b16 %v410, %v410
        %v415 = vpack.c.b16 %v411, %v411
        %v416 = vpack.c.b16 %v412, %v412
        %v417 = vpack.c.b16 %v413, %v413
        %422 = vxpose.xlu0.c.b16.start [1/8] %v414, 128
        %423 = vxpose.xlu0.c.b16.cont [2/8] 0, 128
        %424 = vxpose.xlu0.c.b16.cont [3/8] 0, 128
        %425 = vxpose.xlu0.c.b16.cont [4/8] 0, 128
        %426 = vxpose.xlu0.c.b16.cont [5/8] 0, 128
        %427 = vxpose.xlu0.c.b16.cont [6/8] 0, 128
        %428 = vxpose.xlu0.c.b16.cont [7/8] 0, 128
        %429 = vxpose.xlu0.c.b16.end [8/8] 0, 128
        %v430 = vpop.trf.xlu0
        %v431 = vpop.trf.xlu0
        %v432 = vpop.trf.xlu0
        %v433 = vpop.trf.xlu0
        %v434 = vpop.trf.xlu0
        %v435 = vpop.trf.xlu0
        %v436 = vpop.trf.xlu0
        %v437 = vpop.trf.xlu0
        %438 = vxpose.xlu0.c.b16.start [1/8] %v415, 128
        %439 = vxpose.xlu0.c.b16.cont [2/8] 0, 128
        %440 = vxpose.xlu0.c.b16.cont [3/8] 0, 128
        %441 = vxpose.xlu0.c.b16.cont [4/8] 0, 128
        %442 = vxpose.xlu0.c.b16.cont [5/8] 0, 128
        %443 = vxpose.xlu0.c.b16.cont [6/8] 0, 128
        %444 = vxpose.xlu0.c.b16.cont [7/8] 0, 128
        %445 = vxpose.xlu0.c.b16.end [8/8] 0, 128
        %v446 = vpop.trf.xlu0
        %v447 = vpop.trf.xlu0
        %v448 = vpop.trf.xlu0
        %v449 = vpop.trf.xlu0
        %v450 = vpop.trf.xlu0
        %v451 = vpop.trf.xlu0
        %v452 = vpop.trf.xlu0
        %v453 = vpop.trf.xlu0
        %454 = vxpose.xlu0.c.b16.start [1/8] %v416, 128
        %455 = vxpose.xlu0.c.b16.cont [2/8] 0, 128
        %456 = vxpose.xlu0.c.b16.cont [3/8] 0, 128
        %457 = vxpose.xlu0.c.b16.cont [4/8] 0, 128
        %458 = vxpose.xlu0.c.b16.cont [5/8] 0, 128
        %459 = vxpose.xlu0.c.b16.cont [6/8] 0, 128
        %460 = vxpose.xlu0.c.b16.cont [7/8] 0, 128
        %461 = vxpose.xlu0.c.b16.end [8/8] 0, 128
        %v462 = vpop.trf.xlu0
        %v463 = vpop.trf.xlu0
        %v464 = vpop.trf.xlu0
        %v465 = vpop.trf.xlu0
        %v466 = vpop.trf.xlu0
        %v467 = vpop.trf.xlu0
        %v468 = vpop.trf.xlu0
        %v469 = vpop.trf.xlu0
        %470 = vxpose.xlu0.c.b16.start [1/8] %v417, 128
        %471 = vxpose.xlu0.c.b16.cont [2/8] 0, 128
        %472 = vxpose.xlu0.c.b16.cont [3/8] 0, 128
        %473 = vxpose.xlu0.c.b16.cont [4/8] 0, 128
        %474 = vxpose.xlu0.c.b16.cont [5/8] 0, 128
        %475 = vxpose.xlu0.c.b16.cont [6/8] 0, 128
        %476 = vxpose.xlu0.c.b16.cont [7/8] 0, 128
        %477 = vxpose.xlu0.c.b16.end [8/8] 0, 128
        %v478 = vpop.trf.xlu0
        %v479 = vpop.trf.xlu0
        %v480 = vpop.trf.xlu0
        %v481 = vpop.trf.xlu0
        %v482 = vpop.trf.xlu0
        %v483 = vpop.trf.xlu0
        %v484 = vpop.trf.xlu0
        %v485 = vpop.trf.xlu0
        %vm486 = vcmask 60416
        %487 = vst.msk [vmem:[%s220] sm:$0xf] %vm486, %v430
        %488 = vst.msk [vmem:[%s220 + $0x4] sm:$0xf] %vm486, %v446
        %489 = vst.msk [vmem:[%s220 + $0x8] sm:$0xf] %vm486, %v462
        %490 = vst.msk [vmem:[%s220 + $0xc] sm:$0xf] %vm486, %v478
        %v493 = vunpack.c.l.b16 %v404
        %v494 = vunpack.c.h.b16 %v404
        %v495 = vunpack.c.l.b16 %v405
        %v496 = vunpack.c.h.b16 %v405
        %v497 = vpack.c.b16 %v493, %v493
        %v498 = vpack.c.b16 %v494, %v494
        %v499 = vpack.c.b16 %v495, %v495
        %v500 = vpack.c.b16 %v496, %v496
        %505 = vxpose.xlu0.c.b16.start [1/8] %v497, 128
        %506 = vxpose.xlu0.c.b16.cont [2/8] 0, 128
        %507 = vxpose.xlu0.c.b16.cont [3/8] 0, 128
        %508 = vxpose.xlu0.c.b16.cont [4/8] 0, 128
        %509 = vxpose.xlu0.c.b16.cont [5/8] 0, 128
        %510 = vxpose.xlu0.c.b16.cont [6/8] 0, 128
        %511 = vxpose.xlu0.c.b16.cont [7/8] 0, 128
        %512 = vxpose.xlu0.c.b16.end [8/8] 0, 128
        %v513 = vpop.trf.xlu0
        %v514 = vpop.trf.xlu0
        %v515 = vpop.trf.xlu0
        %v516 = vpop.trf.xlu0
        %v517 = vpop.trf.xlu0
        %v518 = vpop.trf.xlu0
        %v519 = vpop.trf.xlu0
        %v520 = vpop.trf.xlu0
        %521 = vxpose.xlu0.c.b16.start [1/8] %v498, 128
        %522 = vxpose.xlu0.c.b16.cont [2/8] 0, 128
        %523 = vxpose.xlu0.c.b16.cont [3/8] 0, 128
        %524 = vxpose.xlu0.c.b16.cont [4/8] 0, 128
        %525 = vxpose.xlu0.c.b16.cont [5/8] 0, 128
        %526 = vxpose.xlu0.c.b16.cont [6/8] 0, 128
        %527 = vxpose.xlu0.c.b16.cont [7/8] 0, 128
        %528 = vxpose.xlu0.c.b16.end [8/8] 0, 128
        %v529 = vpop.trf.xlu0
        %v530 = vpop.trf.xlu0
        %v531 = vpop.trf.xlu0
        %v532 = vpop.trf.xlu0
        %v533 = vpop.trf.xlu0
        %v534 = vpop.trf.xlu0
        %v535 = vpop.trf.xlu0
        %v536 = vpop.trf.xlu0
        %537 = vxpose.xlu0.c.b16.start [1/8] %v499, 128
        %538 = vxpose.xlu0.c.b16.cont [2/8] 0, 128
        %539 = vxpose.xlu0.c.b16.cont [3/8] 0, 128
        %540 = vxpose.xlu0.c.b16.cont [4/8] 0, 128
        %541 = vxpose.xlu0.c.b16.cont [5/8] 0, 128
        %542 = vxpose.xlu0.c.b16.cont [6/8] 0, 128
        %543 = vxpose.xlu0.c.b16.cont [7/8] 0, 128
        %544 = vxpose.xlu0.c.b16.end [8/8] 0, 128
        %v545 = vpop.trf.xlu0
        %v546 = vpop.trf.xlu0
        %v547 = vpop.trf.xlu0
        %v548 = vpop.trf.xlu0
        %v549 = vpop.trf.xlu0
        %v550 = vpop.trf.xlu0
        %v551 = vpop.trf.xlu0
        %v552 = vpop.trf.xlu0
        %553 = vxpose.xlu0.c.b16.start [1/8] %v500, 128
        %554 = vxpose.xlu0.c.b16.cont [2/8] 0, 128
        %555 = vxpose.xlu0.c.b16.cont [3/8] 0, 128
        %556 = vxpose.xlu0.c.b16.cont [4/8] 0, 128
        %557 = vxpose.xlu0.c.b16.cont [5/8] 0, 128
        %558 = vxpose.xlu0.c.b16.cont [6/8] 0, 128
        %559 = vxpose.xlu0.c.b16.cont [7/8] 0, 128
        %560 = vxpose.xlu0.c.b16.end [8/8] 0, 128
        %v561 = vpop.trf.xlu0
        %v562 = vpop.trf.xlu0
        %v563 = vpop.trf.xlu0
        %v564 = vpop.trf.xlu0
        %v565 = vpop.trf.xlu0
        %v566 = vpop.trf.xlu0
        %v567 = vpop.trf.xlu0
        %v568 = vpop.trf.xlu0
        %569 = vst.msk [vmem:[%s227] sm:$0xf] %vm486, %v513
        %570 = vst.msk [vmem:[%s227 + $0x4] sm:$0xf] %vm486, %v529
        %571 = vst.msk [vmem:[%s227 + $0x8] sm:$0xf] %vm486, %v545
        %572 = vst.msk [vmem:[%s227 + $0xc] sm:$0xf] %vm486, %v561
        %v575 = vunpack.c.l.b16 %v406
        %v576 = vunpack.c.h.b16 %v406
        %v577 = vunpack.c.l.b16 %v407
        %v578 = vunpack.c.h.b16 %v407
        %v579 = vpack.c.b16 %v575, %v575
        %v580 = vpack.c.b16 %v576, %v576
        %v581 = vpack.c.b16 %v577, %v577
        %v582 = vpack.c.b16 %v578, %v578
        %587 = vxpose.xlu0.c.b16.start [1/8] %v579, 128
        %588 = vxpose.xlu0.c.b16.cont [2/8] 0, 128
        %589 = vxpose.xlu0.c.b16.cont [3/8] 0, 128
        %590 = vxpose.xlu0.c.b16.cont [4/8] 0, 128
        %591 = vxpose.xlu0.c.b16.cont [5/8] 0, 128
        %592 = vxpose.xlu0.c.b16.cont [6/8] 0, 128
        %593 = vxpose.xlu0.c.b16.cont [7/8] 0, 128
        %594 = vxpose.xlu0.c.b16.end [8/8] 0, 128
        %v595 = vpop.trf.xlu0
        %v596 = vpop.trf.xlu0
        %v597 = vpop.trf.xlu0
        %v598 = vpop.trf.xlu0
        %v599 = vpop.trf.xlu0
        %v600 = vpop.trf.xlu0
        %v601 = vpop.trf.xlu0
        %v602 = vpop.trf.xlu0
        %603 = vxpose.xlu0.c.b16.start [1/8] %v580, 128
        %604 = vxpose.xlu0.c.b16.cont [2/8] 0, 128
        %605 = vxpose.xlu0.c.b16.cont [3/8] 0, 128
        %606 = vxpose.xlu0.c.b16.cont [4/8] 0, 128
        %607 = vxpose.xlu0.c.b16.cont [5/8] 0, 128
        %608 = vxpose.xlu0.c.b16.cont [6/8] 0, 128
        %609 = vxpose.xlu0.c.b16.cont [7/8] 0, 128
        %610 = vxpose.xlu0.c.b16.end [8/8] 0, 128
        %v611 = vpop.trf.xlu0
        %v612 = vpop.trf.xlu0
        %v613 = vpop.trf.xlu0
        %v614 = vpop.trf.xlu0
        %v615 = vpop.trf.xlu0
        %v616 = vpop.trf.xlu0
        %v617 = vpop.trf.xlu0
        %v618 = vpop.trf.xlu0
        %619 = vxpose.xlu0.c.b16.start [1/8] %v581, 128
        %620 = vxpose.xlu0.c.b16.cont [2/8] 0, 128
        %621 = vxpose.xlu0.c.b16.cont [3/8] 0, 128
        %622 = vxpose.xlu0.c.b16.cont [4/8] 0, 128
        %623 = vxpose.xlu0.c.b16.cont [5/8] 0, 128
        %624 = vxpose.xlu0.c.b16.cont [6/8] 0, 128
        %625 = vxpose.xlu0.c.b16.cont [7/8] 0, 128
        %626 = vxpose.xlu0.c.b16.end [8/8] 0, 128
        %v627 = vpop.trf.xlu0
        %v628 = vpop.trf.xlu0
        %v629 = vpop.trf.xlu0
        %v630 = vpop.trf.xlu0
        %v631 = vpop.trf.xlu0
        %v632 = vpop.trf.xlu0
        %v633 = vpop.trf.xlu0
        %v634 = vpop.trf.xlu0
        %635 = vxpose.xlu0.c.b16.start [1/8] %v582, 128
        %636 = vxpose.xlu0.c.b16.cont [2/8] 0, 128
        %637 = vxpose.xlu0.c.b16.cont [3/8] 0, 128
        %638 = vxpose.xlu0.c.b16.cont [4/8] 0, 128
        %639 = vxpose.xlu0.c.b16.cont [5/8] 0, 128
        %640 = vxpose.xlu0.c.b16.cont [6/8] 0, 128
        %641 = vxpose.xlu0.c.b16.cont [7/8] 0, 128
        %642 = vxpose.xlu0.c.b16.end [8/8] 0, 128
        %v643 = vpop.trf.xlu0
        %v644 = vpop.trf.xlu0
        %v645 = vpop.trf.xlu0
        %v646 = vpop.trf.xlu0
        %v647 = vpop.trf.xlu0
        %v648 = vpop.trf.xlu0
        %v649 = vpop.trf.xlu0
        %v650 = vpop.trf.xlu0
        %651 = vst.msk [vmem:[%s234] sm:$0xf] %vm486, %v595
        %652 = vst.msk [vmem:[%s234 + $0x4] sm:$0xf] %vm486, %v611
        %653 = vst.msk [vmem:[%s234 + $0x8] sm:$0xf] %vm486, %v627
        %654 = vst.msk [vmem:[%s234 + $0xc] sm:$0xf] %vm486, %v643
        %s655 = sand.u32 %s93, 1
        %s656 = scalar_lea.sflag [#allocation3], %s655
        %s657 = sand.u32 %s93, 1
        %s658 = smul.addr %s657, 16
        %s659 = scalar_lea.vmem [#allocation2], %s658
        %s660 = sand.u32 %s22, 1
        %s661 = scalar_lea.sflag [#allocation5], %s660
        %s662 = sand.u32 %s121, 1
        %s663 = smul.addr %s662, 16
        %s664 = scalar_lea.vmem [#allocation4], %s663
        %s665 = sand.u32 %s22, 1
        %s666 = scalar_lea.sflag [#allocation5], %s665
        %s667 = sand.u32 %s149, 1
        %s668 = smul.addr %s667, 16
        %s669 = scalar_lea.vmem [#allocation6], %s668
        // Predicated region
        $region29: #{tpu_custom_call.1} parent=27 // pred_check
          %p670 = pneg %p103
        $region30: #{tpu_custom_call.1} parent=27 // pred_check_branch
          %672 = sbr.rel (%p670) target = $region32
        $region31: #{tpu_custom_call.1} parent=27 // pred_region
          %s674 = ssub.s32 256, 256
          %675 = vsyncadd %s656, %s674
          %s676 = smul.addr %s26, 4
          %s677 = sadd.s32 %s27, %s676
          %s678 = smul.addr %s677, 64
          %s679 = scalar_lea.hbm %s2, %s678
          %s680 = sshll.u32 %s659, 4
          %s681 = int_to_ptr.vmem [resolvable:$true] %s680
          %686 = dma.vmem_to_hbm [thread:$0]  %s681, 256, %s679, %s656, 64, 64, 4
        $region32: #{tpu_custom_call.1} parent=27 // pred_fallthru
          _
        // Predicated region
        $region33: #{tpu_custom_call.1} parent=27 // pred_check
          %p687 = pneg %p131
        $region34: #{tpu_custom_call.1} parent=27 // pred_check_branch
          %689 = sbr.rel (%p687) target = $region36
        $region35: #{tpu_custom_call.1} parent=27 // pred_region
          %s691 = ssub.s32 256, 256
          %692 = vsyncadd %s661, %s691
          %s693 = smul.addr %s26, 4
          %s694 = sadd.s32 %s27, %s693
          %s695 = smul.addr %s694, 64
          %s696 = scalar_lea.hbm %s3, %s695
          %s697 = sshll.u32 %s664, 4
          %s698 = int_to_ptr.vmem [resolvable:$true] %s697
          %703 = dma.vmem_to_hbm [thread:$0]  %s698, 256, %s696, %s661, 64, 64, 4
        $region36: #{tpu_custom_call.1} parent=27 // pred_fallthru
          _
        // Predicated region
        $region37: #{tpu_custom_call.1} parent=27 // pred_check
          %p704 = pneg %p159
        $region38: #{tpu_custom_call.1} parent=27 // pred_check_branch
          %706 = sbr.rel (%p704) target = $region40
        $region39: #{tpu_custom_call.1} parent=27 // pred_region
          %s708 = ssub.s32 256, 256
          %709 = vsyncadd %s666, %s708
          %s710 = smul.addr %s26, 4
          %s711 = sadd.s32 %s27, %s710
          %s712 = smul.addr %s711, 64
          %s713 = scalar_lea.hbm %s4, %s712
          %s714 = sshll.u32 %s669, 4
          %s715 = int_to_ptr.vmem [resolvable:$true] %s714
          %720 = dma.vmem_to_hbm [thread:$0]  %s715, 256, %s713, %s666, 64, 64, 4
        $region40: #{tpu_custom_call.1} parent=27 // pred_fallthru
          _
      $region28: #{tpu_custom_call.1} parent=5 // pred_fallthru
        _
      %p721 = scmp.le.s32.totalorder 2, %s17
      // Predicated region
      $region41: #{tpu_custom_call.1} parent=5 // pred_check
        %p722 = pneg %p721
      $region42: #{tpu_custom_call.1} parent=5 // pred_check_branch
        %724 = sbr.rel (%p722) target = $region44
      $region43: #{tpu_custom_call.1} parent=5 // pred_region
        %s725 = ssub.s32 %s17, 2
        // Predicated region
        $region45: #{tpu_custom_call.1} parent=43 // pred_check
          %p726 = pneg %p109
        $region46: #{tpu_custom_call.1} parent=43 // pred_check_branch
          %728 = sbr.rel (%p726) target = $region48
        $region47: #{tpu_custom_call.1} parent=43 // pred_region
          %s729 = sand.u32 %s94, 1
          %s730 = scalar_lea.sflag [#allocation3], %s729
          %s731 = sand.u32 %s94, 1
          %s732 = smul.addr %s731, 16
          %s733 = scalar_lea.vmem [#allocation2], %s732
          %734 = dma.done %s730, 256
        $region48: #{tpu_custom_call.1} parent=43 // pred_fallthru
          _
        // Predicated region
        $region49: #{tpu_custom_call.1} parent=43 // pred_check
          %p735 = pneg %p137
        $region50: #{tpu_custom_call.1} parent=43 // pred_check_branch
          %737 = sbr.rel (%p735) target = $region52
        $region51: #{tpu_custom_call.1} parent=43 // pred_region
          %s738 = sand.u32 %s23, 1
          %s739 = scalar_lea.sflag [#allocation5], %s738
          %s740 = sand.u32 %s122, 1
          %s741 = smul.addr %s740, 16
          %s742 = scalar_lea.vmem [#allocation4], %s741
          %743 = dma.done %s739, 256
        $region52: #{tpu_custom_call.1} parent=43 // pred_fallthru
          _
        // Predicated region
        $region53: #{tpu_custom_call.1} parent=43 // pred_check
          %p744 = pneg %p165
        $region54: #{tpu_custom_call.1} parent=43 // pred_check_branch
          %746 = sbr.rel (%p744) target = $region56
        $region55: #{tpu_custom_call.1} parent=43 // pred_region
          %s747 = sand.u32 %s23, 1
          %s748 = scalar_lea.sflag [#allocation5], %s747
          %s749 = sand.u32 %s150, 1
          %s750 = smul.addr %s749, 16
          %s751 = scalar_lea.vmem [#allocation6], %s750
          %752 = dma.done %s748, 256
        $region56: #{tpu_custom_call.1} parent=43 // pred_fallthru
          _
      $region44: #{tpu_custom_call.1} parent=5 // pred_fallthru
        _
    $region6: #{tpu_custom_call.1} parent=1 // loop_footer
      %s21 = sadd.s32 1, %s17
    $region7: #{tpu_custom_call.1} parent=1 // loop_footer_branch
      %16 = sbr.rel target = $region3
    $region8: #{tpu_custom_call.1} parent=1 // loop_exit
      _
    %753 = vsyncpa [#allocation3], 1
    %s754 = scalar_lea.sflag [#allocation3], 1
    %755 = vsyncpa %s754, 1
    %756 = vsyncpa [#allocation5], 1
    %s757 = scalar_lea.sflag [#allocation5], 1
    %758 = vsyncpa %s757, 1

</llo_original>
